<compile_context>
chip_gen: v7x
topology: tpu7x:2x2x1
jax: 0.10.0
libtpu: 0.0.40
codegen_flags: <defaults>
</compile_context>

<pallas_src>
import jax
import jax.numpy as jnp
import numpy as np
from jax.experimental import pallas as pl
from jax.experimental.pallas import tpu as pltpu


# ----------------------------------------------------------------------------
# Glue: reproduce SkeletonPool.__init__ topology logic in plain Python/NumPy.
# ----------------------------------------------------------------------------
def build_skeleton_pool_weight(edges, channels_per_edge, last_pool=False):
    edge_num = len(edges) + 1
    seq_list = []
    pooling_list = []
    new_edges = []
    degree = [0] * 100
    for edge in edges:
        degree[edge[0]] += 1
        degree[edge[1]] += 1

    def find_seq(j, seq):
        if degree[j] > 2 and j != 0:
            seq_list.append(seq)
            seq = []
        if degree[j] == 1:
            seq_list.append(seq)
            return
        for idx, edge in enumerate(edges):
            if edge[0] == j:
                find_seq(edge[1], seq + [idx])

    find_seq(0, [])
    for seq in seq_list:
        if last_pool:
            pooling_list.append(seq)
            continue
        if len(seq) % 2 == 1:
            pooling_list.append([seq[0]])
            new_edges.append(edges[seq[0]])
            seq = seq[1:]
        for i in range(0, len(seq), 2):
            pooling_list.append([seq[i], seq[i + 1]])
            new_edges.append([edges[seq[i]][0], edges[seq[i + 1]][1]])
    pooling_list.append([edge_num - 1])

    cpe = channels_per_edge
    weight = np.zeros((len(pooling_list) * cpe, edge_num * cpe), dtype=np.float32)
    for i, pair in enumerate(pooling_list):
        for j in pair:
            for c in range(cpe):
                weight[i * cpe + c, j * cpe + c] = 1.0 / len(pair)
    return jnp.asarray(weight), pooling_list


# ----------------------------------------------------------------------------
# Pallas kernel: one MXU matmul per (batch, T-block).
#   w_ref: (M, K)       f32, resident across all grid steps (constant index_map)
#   x_ref: (K, t_blk)   f32, native-layout slab of x[b, :, t0:t0+t_blk]
#   o_ref: (M, t_blk)   f32, written directly into out[b, :, t0:t0+t_blk]
# ----------------------------------------------------------------------------
def _pool_matmul_kernel(w_ref, x_ref, o_ref):
    o_ref[...] = jnp.dot(
        w_ref[...], x_ref[...], preferred_element_type=jnp.float32
    ).astype(o_ref.dtype)


def _round_up(x, m):
    return ((x + m - 1) // m) * m


def skeleton_pool_forward(weight, x, *, t_blk_target=8192):
    """weight: (M, K), x: (B, K, T)  ->  (B, M, T) = weight @ x (batched)."""
    M, K = weight.shape
    B, K2, T = x.shape
    assert K == K2, (K, K2)

    # Keep weight in the activation dtype (entries are tiny constants; cast is ~free).
    w = weight if weight.dtype == x.dtype else weight.astype(x.dtype)

    # Lane (T) block: a multiple of 128 when possible (lane-dense stores), capped at
    # t_blk_target; full-extent block for tiny T.  Partial last block is masked by Pallas.
    if T >= 128:
        t_blk = min(_round_up(T, 128), t_blk_target)
    else:
        t_blk = T
    grid_t = pl.cdiv(T, t_blk)

    flops = 2 * B * M * K * T
    bytes_accessed = (w.size * w.dtype.itemsize
                      + x.size * x.dtype.itemsize
                      + B * M * T * x.dtype.itemsize)

    out = pl.pallas_call(
        _pool_matmul_kernel,
        out_shape=jax.ShapeDtypeStruct((B, M, T), x.dtype),
        grid_spec=pltpu.PrefetchScalarGridSpec(
            num_scalar_prefetch=0,
            grid=(B, grid_t),
            in_specs=[
                # Tiny weight: constant block index => stays resident, no re-DMA per step.
                pl.BlockSpec((M, K), lambda b, n: (0, 0)),
                # Native-layout input slab; batch dim squeezed away inside the kernel.
                pl.BlockSpec((pl.Squeezed(), K, t_blk), lambda b, n: (b, 0, n)),
            ],
            out_specs=pl.BlockSpec((pl.Squeezed(), M, t_blk), lambda b, n: (b, 0, n)),
        ),
        compiler_params=pltpu.CompilerParams(
            # Independent output blocks on both axes -> megacore sharding on v7x.
            dimension_semantics=("parallel", "parallel"),
        ),
        cost_estimate=pl.CostEstimate(
            flops=flops, transcendentals=0, bytes_accessed=bytes_accessed),
    )(w, x)
    return out


# ----------------------------------------------------------------------------
# Demo / self-check
# ----------------------------------------------------------------------------
if __name__ == "__main__":
    # Simple 3-branch skeleton rooted at node 0 (9 edges -> edge_num = 10).
    edges = [
        [0, 1], [1, 2], [2, 3],
        [0, 4], [4, 5], [5, 6],
        [0, 7], [7, 8], [8, 9],
    ]
    channels_per_edge = 4
    weight, pooling_list = build_skeleton_pool_weight(
        edges, channels_per_edge, last_pool=False)
    M, K = weight.shape  # M = len(pooling_list)*cpe = 28, K = edge_num*cpe = 40

    B, T = 2, 128
    key = jax.random.PRNGKey(0)
    x = jax.random.normal(key, (B, K, T), dtype=jnp.float32)

    out = skeleton_pool_forward(weight, x)
    out = jax.block_until_ready(out)
    assert out.shape == (B, M, T)

    # Reference: exact module semantics (f32 batched matmul).  Tolerance covers any
    # reduced-precision MXU pass the compiler may pick for f32 operands.
    ref = jnp.einsum("mk,bkt->bmt", weight, x)
    np.testing.assert_allclose(np.asarray(out), np.asarray(ref), rtol=2e-2, atol=2e-2)

    print("KERNEL_OK")
</pallas_src>

<mosaic_0001>
module attributes {stable_mosaic.version = 11 : i64} {
  func.func @_pool_matmul_kernel(%arg0: i32, %arg1: i32, %arg2: memref<28x40xf32, #tpu.memory_space<vmem>>, %arg3: memref<1x40x128xf32, #tpu.memory_space<vmem>>, %arg4: memref<1x28x128xf32, #tpu.memory_space<vmem>>) attributes {dimension_semantics = [#tpu.dimension_semantics<parallel>, #tpu.dimension_semantics<parallel>], iteration_bounds = array<i64: 2, 1>, scalar_prefetch = 0 : i64, scratch_operands = 0 : i64, tpu.core_type = #tpu.core_type<tc>, window_params = [{pipeline_mode = #tpu.pipeline_mode<synchronous>, transform_indices = @transform_0, window_bounds = array<i64: 28, 40>}, {transform_indices = @transform_1, window_bounds = array<i64: 1, 40, 128>}, {transform_indices = @transform_2, window_bounds = array<i64: 1, 28, 128>}]} {
    %c0 = arith.constant 0 : index
    %c0_0 = arith.constant 0 : index
    %0 = vector.load %arg2[%c0, %c0_0] : memref<28x40xf32, #tpu.memory_space<vmem>>, vector<28x40xf32>
    %c0_1 = arith.constant 0 : index
    %c0_2 = arith.constant 0 : index
    %c0_3 = arith.constant 0 : index
    %1 = vector.load %arg3[%c0_1, %c0_2, %c0_3] : memref<1x40x128xf32, #tpu.memory_space<vmem>>, vector<1x40x128xf32>
    %2 = vector.shape_cast %1 : vector<1x40x128xf32> to vector<40x128xf32>
    %cst = arith.constant dense<0.000000e+00> : vector<28x128xf32>
    %3 = tpu.matmul %0, %2, %cst {dimension_numbers = #tpu.dot_dimension_numbers<[1], [0], [0], [1], [0, 0, 1, 1], [], []>} : vector<28x40xf32>, vector<40x128xf32>, vector<28x128xf32> -> vector<28x128xf32>
    %c0_4 = arith.constant 0 : index
    %c0_5 = arith.constant 0 : index
    %c0_6 = arith.constant 0 : index
    %4 = vector.load %arg4[%c0_4, %c0_5, %c0_6] : memref<1x28x128xf32, #tpu.memory_space<vmem>>, vector<1x28x128xf32>
    %5 = vector.shape_cast %4 : vector<1x28x128xf32> to vector<28x128xf32>
    %6 = vector.shape_cast %3 : vector<28x128xf32> to vector<1x28x128xf32>
    tpu.vector_store %arg4[%c0_4, %c0_5, %c0_6], %6 {strides = array<i32>} : memref<1x28x128xf32, #tpu.memory_space<vmem>>, vector<1x28x128xf32>,
    return
  }
  func.func @transform_0(%arg0: i32, %arg1: i32) -> (i32, i32) {
    %c0_i32 = arith.constant 0 : i32
    %c0_i32_0 = arith.constant 0 : i32
    %c0_i32_1 = arith.constant 0 : i32
    return %c0_i32, %c0_i32_0 : i32, i32
  }
  func.func @transform_1(%arg0: i32, %arg1: i32) -> (i32, i32, i32) {
    %c0_i32 = arith.constant 0 : i32
    %c0_i32_0 = arith.constant 0 : i32
    return %arg0, %c0_i32, %arg1 : i32, i32, i32
  }
  func.func @transform_2(%arg0: i32, %arg1: i32) -> (i32, i32, i32) {
    %c0_i32 = arith.constant 0 : i32
    %c0_i32_0 = arith.constant 0 : i32
    return %arg0, %c0_i32, %arg1 : i32, i32, i32
  }
}

</mosaic_0001>

<llo_original>
// kernel: tpu_custom_call.1
$region0: #{tpu_custom_call.1}
  #allocation0 [shape = 'u32[]', space=smem, size = 0x4, offset = 0x4, fixed_abs, tag = 'smem constant byte address 0x4 - core index']
  #allocation1 [shape = 'u32[144,128]{1,0:T(1,128)}', space=vmem, size = 0x12000, scoped, tag = 'internal scratch']
  %s0 = inlined_call_operand.hbm [shape: f32[28,40], index: 0, kind: input, shape index: {}]
  %s1 = inlined_call_operand.hbm [shape: f32[2,40,128], index: 1, kind: input, shape index: {}]
  %s2 = inlined_call_operand.vmem [shape: f32[2,28,128], index: 2, kind: output, shape index: {}]
  %s3 = sld [smem:[#allocation0]]
  $region49: #{tpu_custom_call.1} parent=0
    _
  %s5 = ssub.s32 1, %s3
  %s6 = scalar_select 0, %s5, %s3
  $region1: #{tpu_custom_call.1} parent=0
    #allocation2 [shape = 'u8[16384]{0}', space=vmem, size = 0x4000, scoped, tag = 'input window, operand 0, single buffered']
    #allocation3 [shape = 's32[2]{0}', space=sflag, size = 0x8, scoped, tag = 'scoped memory for tpu_custom_call.1']
    #allocation4 [shape = 'u8[40960]{0}', space=vmem, size = 0xa000, scoped, tag = 'input window, operand 1']
    #allocation5 [shape = 's32[2]{0}', space=sflag, size = 0x8, scoped, tag = 'scoped memory for tpu_custom_call.1']
    %7 = vsyncpa [#allocation3], 0
    %8 = vsyncpa [#allocation5], 0
    %s9 = scalar_lea.sflag [#allocation5], 1
    %10 = vsyncpa %s9, 0
    loop: start=0, step=1, limit=4
    $region2: #{tpu_custom_call.1} parent=1 // loop_pre_header
      _
    $region3: #{tpu_custom_call.1} parent=1 // loop_header
      %s12 = sphi 0, %s16
      %p13 = scmp.ge.s32.totalorder %s12, 4
      %s19 = sphi 0, %s31
      %s20 = sphi 0, %s27
      %s21 = sphi 0, %s19
      %s22 = sphi 0, %s20
      %s23 = sphi 0, %s21
      %s24 = sphi 0, %s22
      %s32 = sphi 0, %s32
      %s34 = sphi 0, %s32
      %s35 = sphi 0, %s34
      %s49 = sphi 0, %s35
      %s57 = sphi 0, %s59
      %s60 = sphi 0, %s57
      %s61 = sphi 0, %s60
      %s77 = sphi 0, %s61
      %s85 = sphi 0, %s87
      %s88 = sphi 0, %s85
      %s89 = sphi 0, %s88
      %s105 = sphi 0, %s89
    $region4: #{tpu_custom_call.1} parent=1 // loop_header_branch
      %15 = sbr.rel (%p13) target = $region8
    $region5: #{tpu_custom_call.1} parent=1 // loop_body
      %s17 = ssub.s32 %s12, 1
      %s18 = ssub.s32 %s12, 2
      %s25 = sadd.s32 1, %s20
      %p26 = scmp.ge.s32.totalorder %s25, 1
      %s27 = scalar_select %p26, 0, %s25
      %s28 = sadd.s32 1, %s19
      %s29 = scalar_select %p26, %s28, %s19
      %p30 = scmp.ge.s32.totalorder %s29, 2
      %s31 = scalar_select %p30, 0, %s29
      %s33 = sadd.s32 %s32, 1
      %p36 = scmp.eq.s32.totalorder %s12, 1
      %p37 = scmp.ne.s32.totalorder %s32, %s34
      %p38 = scmp.eq.s32.totalorder %s12, 0
      %p39 = por %p37, %p38
      %p40 = scmp.ne.s32.totalorder %s32, %s34
      %p41 = scmp.eq.s32.totalorder %s17, 1
      %p42 = por %p40, %p41
      %p43 = scmp.ne.s32.totalorder %s34, %s35
      %p44 = scmp.eq.s32.totalorder %s17, 0
      %p45 = por %p43, %p44
      %p46 = scmp.ne.s32.totalorder %s34, %s35
      %p47 = scmp.eq.s32.totalorder %s18, 1
      %p48 = por %p46, %p47
      %p50 = scmp.ne.s32.totalorder %s35, %s49
      %p51 = scmp.eq.s32.totalorder %s18, 0
      %p52 = por %p50, %p51
      %s53 = ssub.s32 %s19, %s31
      %s54 = ssub.s32 %s20, %s27
      %s55 = sor.u32 %s53, %s54
      %p56 = scmp.eq.s32.totalorder %s55, 0
      %s58 = sadd.s32 %s57, 1
      %s59 = scalar_select %p56, %s57, %s58
      %p62 = pneg %p56
      %p63 = scmp.eq.s32.totalorder %s12, 1
      %p64 = por %p62, %p63
      %p65 = scmp.ne.s32.totalorder %s57, %s60
      %p66 = scmp.eq.s32.totalorder %s12, 0
      %p67 = por %p65, %p66
      %p68 = scmp.ne.s32.totalorder %s57, %s60
      %p69 = scmp.eq.s32.totalorder %s17, 1
      %p70 = por %p68, %p69
      %p71 = scmp.ne.s32.totalorder %s60, %s61
      %p72 = scmp.eq.s32.totalorder %s17, 0
      %p73 = por %p71, %p72
      %p74 = scmp.ne.s32.totalorder %s60, %s61
      %p75 = scmp.eq.s32.totalorder %s18, 1
      %p76 = por %p74, %p75
      %p78 = scmp.ne.s32.totalorder %s61, %s77
      %p79 = scmp.eq.s32.totalorder %s18, 0
      %p80 = por %p78, %p79
      %s81 = ssub.s32 %s19, %s31
      %s82 = ssub.s32 %s20, %s27
      %s83 = sor.u32 %s81, %s82
      %p84 = scmp.eq.s32.totalorder %s83, 0
      %s86 = sadd.s32 %s85, 1
      %s87 = scalar_select %p84, %s85, %s86
      %p90 = pneg %p84
      %p91 = scmp.eq.s32.totalorder %s12, 1
      %p92 = por %p90, %p91
      %p93 = scmp.ne.s32.totalorder %s85, %s88
      %p94 = scmp.eq.s32.totalorder %s12, 0
      %p95 = por %p93, %p94
      %p96 = scmp.ne.s32.totalorder %s85, %s88
      %p97 = scmp.eq.s32.totalorder %s17, 1
      %p98 = por %p96, %p97
      %p99 = scmp.ne.s32.totalorder %s88, %s89
      %p100 = scmp.eq.s32.totalorder %s17, 0
      %p101 = por %p99, %p100
      %p102 = scmp.ne.s32.totalorder %s88, %s89
      %p103 = scmp.eq.s32.totalorder %s18, 1
      %p104 = por %p102, %p103
      %p106 = scmp.ne.s32.totalorder %s89, %s105
      %p107 = scmp.eq.s32.totalorder %s18, 0
      %p108 = por %p106, %p107
      %p109 = scmp.le.s32.totalorder 1, %s12
      %p110 = scmp.lt.s32.totalorder %s12, 3
      %p111 = pnand %p109, %p110
      %p112 = pneg %p111
      // Predicated region
      $region9: #{tpu_custom_call.1} parent=5 // pred_check
        _
      $region10: #{tpu_custom_call.1} parent=5 // pred_check_branch
        %114 = sbr.rel (%p111) target = $region12
      $region11: #{tpu_custom_call.1} parent=5 // pred_region
        %s115 = ssub.s32 %s12, 1
        // Predicated region
        $region13: #{tpu_custom_call.1} parent=11 // pred_check
          %p116 = pneg %p45
        $region14: #{tpu_custom_call.1} parent=11 // pred_check_branch
          %118 = sbr.rel (%p116) target = $region16
        $region15: #{tpu_custom_call.1} parent=11 // pred_region
          %s120 = ssub.s32 512, 512
          %121 = vsyncadd [#allocation3], %s120
          %s122 = sshll.u32 [#allocation2], 4
          %s123 = int_to_ptr.vmem [resolvable:$true] %s122
          %128 = dma.hbm_to_vmem [thread:$0]  %s0, 512, %s123, [#allocation3], 128, 128, 8
        $region16: #{tpu_custom_call.1} parent=11 // pred_fallthru
          _
      $region12: #{tpu_custom_call.1} parent=5 // pred_fallthru
        _
      %p129 = scmp.lt.s32.totalorder %s12, 2
      // Predicated region
      $region17: #{tpu_custom_call.1} parent=5 // pred_check
        %p130 = pneg %p129
      $region18: #{tpu_custom_call.1} parent=5 // pred_check_branch
        %132 = sbr.rel (%p130) target = $region20
      $region19: #{tpu_custom_call.1} parent=5 // pred_region
        // Predicated region
        $region21: #{tpu_custom_call.1} parent=19 // pred_check
          %p133 = pneg %p67
        $region22: #{tpu_custom_call.1} parent=19 // pred_check_branch
          %135 = sbr.rel (%p133) target = $region24
        $region23: #{tpu_custom_call.1} parent=19 // pred_region
          %s136 = sand.u32 %s57, 1
          %s137 = scalar_lea.sflag [#allocation5], %s136
          %s138 = sand.u32 %s57, 1
          %s139 = smul.addr %s138, 40
          %s140 = scalar_lea.vmem [#allocation4], %s139
          %s142 = ssub.s32 640, 640
          %143 = vsyncadd %s137, %s142
          %s144 = smul.addr %s19, 5
          %s145 = sadd.s32 %s20, %s144
          %s146 = smul.addr %s145, 128
          %s147 = scalar_lea.hbm %s1, %s146
          %s148 = sshll.u32 %s140, 4
          %s149 = int_to_ptr.vmem [resolvable:$true] %s148
          %154 = dma.hbm_to_vmem [thread:$0]  %s147, 640, %s149, %s137, 128, 128, 8
        $region24: #{tpu_custom_call.1} parent=19 // pred_fallthru
          _
      $region20: #{tpu_custom_call.1} parent=5 // pred_fallthru
        _
      %p155 = scmp.le.s32.totalorder 1, %s12
      %p156 = scmp.lt.s32.totalorder %s12, 3
      %p157 = pnand %p155, %p156
      %p158 = pneg %p157
      // Predicated region
      $region25: #{tpu_custom_call.1} parent=5 // pred_check
        _
      $region26: #{tpu_custom_call.1} parent=5 // pred_check_branch
        %160 = sbr.rel (%p157) target = $region28
      $region27: #{tpu_custom_call.1} parent=5 // pred_region
        %s161 = ssub.s32 %s12, 1
        // Predicated region
        $region29: #{tpu_custom_call.1} parent=27 // pred_check
          %p162 = pneg %p45
        $region30: #{tpu_custom_call.1} parent=27 // pred_check_branch
          %164 = sbr.rel (%p162) target = $region32
        $region31: #{tpu_custom_call.1} parent=27 // pred_region
          %165 = dma.done [#allocation3], 512
        $region32: #{tpu_custom_call.1} parent=27 // pred_fallthru
          _
        %s166 = sand.u32 %s60, 1
        %s167 = scalar_lea.sflag [#allocation5], %s166
        %s168 = sand.u32 %s60, 1
        %s169 = smul.addr %s168, 40
        %s170 = scalar_lea.vmem [#allocation4], %s169
        // Predicated region
        $region33: #{tpu_custom_call.1} parent=27 // pred_check
          %p171 = pneg %p73
        $region34: #{tpu_custom_call.1} parent=27 // pred_check_branch
          %173 = sbr.rel (%p171) target = $region36
        $region35: #{tpu_custom_call.1} parent=27 // pred_region
          %174 = dma.done %s167, 640
        $region36: #{tpu_custom_call.1} parent=27 // pred_fallthru
          _
        %p175 = pneg %p45
        %p176 = pneg %p42
        %s177 = sand.u32 %s60, 1
        %s178 = scalar_lea.sflag [#allocation5], %s177
        %s179 = sand.u32 %s60, 1
        %s180 = smul.addr %s179, 40
        %s181 = scalar_lea.vmem [#allocation4], %s180
        %p182 = pneg %p73
        %p183 = pneg %p70
        %p184 = pneg %p101
        %p185 = pneg %p98
        %p186 = scmp.lt.s32.totalorder %s21, 1
        %s187 = scalar_select %p186, %s21, 1
        %p188 = scmp.lt.s32.totalorder %s22, 0
        %s189 = scalar_select %p188, %s22, 0
        %s190 = smul.addr %s187, 4
        %s191 = sadd.s32 %s189, %s190
        %s192 = smul.addr %s191, 8
        %s193 = scalar_lea.vmem %s2, %s192
        %p194 = scmp.lt.s32.totalorder %s21, 1
        %s195 = scalar_select %p194, %s21, 1
        %p196 = scmp.lt.s32.totalorder %s22, 0
        %s197 = scalar_select %p196, %s22, 0
        %s198 = smul.addr %s195, 4
        %s199 = sadd.s32 %s197, %s198
        %s200 = smul.addr %s199, 8
        %s201 = scalar_lea.vmem %s2, %s200
        %v202 = vld [vmem:[#allocation2] sm:$0xff]
        %v203 = vld [vmem:[#allocation2 + $0x8] sm:$0xff]
        %v204 = vld [vmem:[#allocation2 + $0x10] sm:$0xff]
        %v205 = vld [vmem:[#allocation2 + $0x18] sm:$0xf]
        %v206 = vld [vmem:[%s170] sm:$0xff]
        %v207 = vld [vmem:[%s170 + $0x8] sm:$0xff]
        %v208 = vld [vmem:[%s170 + $0x10] sm:$0xff]
        %v209 = vld [vmem:[%s170 + $0x18] sm:$0xff]
        %v210 = vld [vmem:[%s170 + $0x20] sm:$0xff]
        %vm211 = vcmask 326656
        %v213 = vsel %vm211, %v202, 0
        %v216 = vsel %vm211, %v203, 0
        %v219 = vsel %vm211, %v204, 0
        %v222 = vsel %vm211, %v205, 0
        %224 = vmatprep.subr.mxu0 0.0
        %225 = vmatpush1.msra.mxu0 %v206
        %226 = vmatprep.subr.mxu0 0.0
        %227 = vmatpush1.msra.mxu0 %v207
        %228 = vmatprep.subr.mxu0 0.0
        %229 = vmatpush1.msra.mxu0 %v208
        %230 = vmatprep.subr.mxu0 0.0
        %231 = vmatpush1.msra.mxu0 %v209
        %232 = vmatprep.subr.mxu0 0.0
        %233 = vmatpush1.msra.mxu0 %v210
        %234 = vmatprep.subr.mxu0 0.0
        %235 = vmatpush1.msra.mxu0 0.0
        %236 = vmatprep.subr.mxu0 0.0
        %237 = vmatpush1.msra.mxu0 0.0
        %238 = vmatprep.subr.mxu0 0.0
        %239 = vmatpush1.msra.mxu0 0.0
        %240 = vmatprep.subr.mxu0 0.0
        %241 = vmatpush1.msra.mxu0 0.0
        %242 = vmatprep.subr.mxu0 0.0
        %243 = vmatpush1.msra.mxu0 0.0
        %244 = vmatprep.subr.mxu0 0.0
        %245 = vmatpush1.msra.mxu0 0.0
        %246 = vmatprep.subr.mxu0 0.0
        %247 = vmatpush1.msra.mxu0 0.0
        %248 = vmatprep.subr.mxu0 0.0
        %249 = vmatpush1.msra.mxu0 0.0
        %250 = vmatprep.subr.mxu0 0.0
        %251 = vmatpush1.msra.mxu0 0.0
        %252 = vmatprep.subr.mxu0 0.0
        %253 = vmatpush1.msra.mxu0 0.0
        %254 = vmatprep.subr.mxu0 0.0
        %255 = vmatpush1.msra.mxu0 0.0
        %256 = vmatprep.subr.mxu0 0.0
        %257 = vmatpush1.msra.mxu0 0.0
        %258 = vmatprep.subr.mxu0 0.0
        %259 = vmatpush1.msra.mxu0 0.0
        %260 = vmatprep.subr.mxu0 0.0
        %261 = vmatpush1.msra.mxu0 0.0
        %262 = vmatprep.subr.mxu0 0.0
        %263 = vmatpush1.msra.mxu0 0.0
        %264 = vmatprep.subr.mxu0 0.0
        %265 = vmatpush1.msra.mxu0 0.0
        %266 = vmatprep.subr.mxu0 0.0
        %267 = vmatpush1.msra.mxu0 0.0
        %268 = vmatprep.subr.mxu0 0.0
        %269 = vmatpush1.msra.mxu0 0.0
        %270 = vmatprep.subr.mxu0 0.0
        %271 = vmatpush1.msra.mxu0 0.0
        %272 = vmatprep.subr.mxu0 0.0
        %273 = vmatpush1.msra.mxu0 0.0
        %274 = vmatprep.subr.mxu0 0.0
        %275 = vmatpush1.msra.mxu0 0.0
        %276 = vmatprep.subr.mxu0 0.0
        %277 = vmatpush1.msra.mxu0 0.0
        %278 = vmatprep.subr.mxu0 0.0
        %279 = vmatpush1.msra.mxu0 0.0
        %280 = vmatprep.subr.mxu0 0.0
        %281 = vmatpush1.msra.mxu0 0.0
        %282 = vmatprep.subr.mxu0 0.0
        %283 = vmatpush1.msra.mxu0 0.0
        %284 = vmatprep.subr.mxu0 0.0
        %285 = vmatpush1.msra.mxu0 0.0
        %286 = vmatprep.subr.mxu0 0.0
        %287 = vmatpush1.msra.mxu0 0.0
        %288 = vmatprep.mubr.f32.mxu0 0.0
        %289 = vmatmul.mubr.f32.gmra.mrb[0].mxu0 %v213
        %v290 = vpop.f32.mrb[0].mxu0
        %v291 = vadd.f32 0.0, %v290
        %v292 = vpop.f32.mrb[0].mxu0
        %293 = vmatprep.mubr.f32.mxu0 0.0
        %294 = vmatmul.mubr.f32.gmra.mrb[0].mxu0 %v216
        %v295 = vpop.f32.mrb[0].mxu0
        %v296 = vadd.f32 0.0, %v295
        %v297 = vpop.f32.mrb[0].mxu0
        %298 = vmatprep.mubr.f32.mxu0 0.0
        %299 = vmatmul.mubr.f32.gmra.mrb[0].mxu0 %v219
        %v300 = vpop.f32.mrb[0].mxu0
        %v301 = vadd.f32 0.0, %v300
        %v302 = vpop.f32.mrb[0].mxu0
        %303 = vmatprep.mubr.f32.mxu0 0.0
        %304 = vmatmul.mubr.f32.gmra.mrb[0].mxu0 %v222
        %v305 = vpop.f32.mrb[0].mxu0
        %v306 = vadd.f32 0.0, %v305
        %v307 = vpop.f32.mrb[0].mxu0
        %308 = vdwg.mxu0
        %309 = vst [vmem:[%s201] sm:$0xff] %v291
        %310 = vst [vmem:[%s201 + $0x8] sm:$0xff] %v296
        %311 = vst [vmem:[%s201 + $0x10] sm:$0xff] %v301
        %312 = vst [vmem:[%s201 + $0x18] sm:$0xf] %v306
        %p313 = scmp.lt.s32.totalorder %s21, 1
        %s314 = scalar_select %p313, %s21, 1
        %p315 = scmp.lt.s32.totalorder %s22, 0
        %s316 = scalar_select %p315, %s22, 0
        %s317 = smul.addr %s314, 4
        %s318 = sadd.s32 %s316, %s317
        %s319 = smul.addr %s318, 8
        %s320 = scalar_lea.vmem %s2, %s319
        // Predicated region
        $region37: #{tpu_custom_call.1} parent=27 // pred_check
          %p321 = pneg %p98
        $region38: #{tpu_custom_call.1} parent=27 // pred_check_branch
          %323 = sbr.rel (%p321) target = $region40
        $region39: #{tpu_custom_call.1} parent=27 // pred_region
          _
        $region40: #{tpu_custom_call.1} parent=27 // pred_fallthru
          _
      $region28: #{tpu_custom_call.1} parent=5 // pred_fallthru
        _
      %p324 = scmp.le.s32.totalorder 2, %s12
      // Predicated region
      $region41: #{tpu_custom_call.1} parent=5 // pred_check
        %p325 = pneg %p324
      $region42: #{tpu_custom_call.1} parent=5 // pred_check_branch
        %327 = sbr.rel (%p325) target = $region44
      $region43: #{tpu_custom_call.1} parent=5 // pred_region
        %s328 = ssub.s32 %s12, 2
        // Predicated region
        $region45: #{tpu_custom_call.1} parent=43 // pred_check
          %p329 = pneg %p104
        $region46: #{tpu_custom_call.1} parent=43 // pred_check_branch
          %331 = sbr.rel (%p329) target = $region48
        $region47: #{tpu_custom_call.1} parent=43 // pred_region
          %p332 = scmp.lt.s32.totalorder %s23, 1
          %s333 = scalar_select %p332, %s23, 1
          %p334 = scmp.lt.s32.totalorder %s24, 0
          %s335 = scalar_select %p334, %s24, 0
          %s336 = smul.addr %s333, 4
          %s337 = sadd.s32 %s335, %s336
          %s338 = smul.addr %s337, 8
          %s339 = scalar_lea.vmem %s2, %s338
        $region48: #{tpu_custom_call.1} parent=43 // pred_fallthru
          _
      $region44: #{tpu_custom_call.1} parent=5 // pred_fallthru
        _
    $region6: #{tpu_custom_call.1} parent=1 // loop_footer
      %s16 = sadd.s32 1, %s12
    $region7: #{tpu_custom_call.1} parent=1 // loop_footer_branch
      %11 = sbr.rel target = $region3
    $region8: #{tpu_custom_call.1} parent=1 // loop_exit
      _
    %340 = vsyncpa [#allocation3], 1
    %s341 = scalar_lea.sflag [#allocation3], 1
    %342 = vsyncpa %s341, 1
    %343 = vsyncpa [#allocation5], 1
    %s344 = scalar_lea.sflag [#allocation5], 1
    %345 = vsyncpa %s344, 1

</llo_original>
